<compile_context>
chip_gen: v7x
topology: tpu7x:2x2x1
jax: 0.10.0
libtpu: 0.0.40
codegen_flags: <defaults>
</compile_context>

<pallas_src>
import functools

import jax
import jax.numpy as jnp
from jax.experimental import pallas as pl
from jax.experimental.pallas import tpu as pltpu

LN_EPS = 1e-5
_CONST_ROWS = 16    # 10 real rows, padded to a multiple of 8 sublanes
_CONST_LANES = 128  # lane-aligned constant slab


def koopman_ae_kernel(
    x_ref, consts_ref,
    ew1_ref, ew2_ref, ew3_ref,
    dw1_ref, dw2_ref, dw3_ref,
    out_ref,
    *, input_dim, hidden_dim, koopman_dim,
):
    x = x_ref[...]                       # (TB, input_dim)
    c = consts_ref[...]                  # (16, 128) packed constants, 1 load

    mu   = c[0:1, :input_dim]
    std  = c[1:2, :input_dim]
    eb1  = c[2:3, :hidden_dim]
    eb2  = c[3:4, :hidden_dim]
    eb3  = c[4:5, :koopman_dim]
    ln_w = c[5:6, :koopman_dim]
    ln_b = c[6:7, :koopman_dim]
    db1  = c[7:8, :hidden_dim]
    db2  = c[8:9, :hidden_dim]
    db3  = c[9:10, :input_dim]

    # _normalize: hoist 1/std to a single [1, F] reciprocal, then VPU multiply.
    inv_std = pl.reciprocal(std, approx=False)
    h = (x - mu) * inv_std

    # encoder: Linear -> Tanh -> Linear -> Tanh -> Linear -> LayerNorm
    h = jnp.tanh(jnp.dot(h, ew1_ref[...], preferred_element_type=jnp.float32) + eb1)
    h = jnp.tanh(jnp.dot(h, ew2_ref[...], preferred_element_type=jnp.float32) + eb2)
    z = jnp.dot(h, ew3_ref[...], preferred_element_type=jnp.float32) + eb3

    m = jnp.mean(z, axis=-1, keepdims=True)
    zc = z - m
    var = jnp.mean(zc * zc, axis=-1, keepdims=True)       # biased var (PyTorch LN)
    z = zc * jax.lax.rsqrt(var + LN_EPS) * ln_w + ln_b

    # decoder: Linear -> Tanh -> Linear -> Tanh -> Linear
    h = jnp.tanh(jnp.dot(z, dw1_ref[...], preferred_element_type=jnp.float32) + db1)
    h = jnp.tanh(jnp.dot(h, dw2_ref[...], preferred_element_type=jnp.float32) + db2)
    y = jnp.dot(h, dw3_ref[...], preferred_element_type=jnp.float32) + db3

    # _unnormalize
    out_ref[...] = std * y + mu


def _pack_consts(params, input_dim, hidden_dim, koopman_dim):
    """Pack the ten [1, F] constant rows into one (16, 128) lane-aligned slab."""
    rows = (
        ("mu", input_dim), ("std", input_dim),
        ("eb1", hidden_dim), ("eb2", hidden_dim), ("eb3", koopman_dim),
        ("ln_w", koopman_dim), ("ln_b", koopman_dim),
        ("db1", hidden_dim), ("db2", hidden_dim), ("db3", input_dim),
    )
    slab = jnp.zeros((_CONST_ROWS, _CONST_LANES), jnp.float32)
    for r, (name, width) in enumerate(rows):
        slab = slab.at[r, :width].set(params[name].reshape(-1).astype(jnp.float32))
    return slab


@functools.partial(jax.jit, static_argnames=("tb",))
def koopman_autoencoder_forward(x, params, tb=512):
    """x: [B, input_dim] float32. params: dict of arrays (see init_params)."""
    B, input_dim = x.shape
    hidden_dim = params["ew1"].shape[1]
    koopman_dim = params["ew3"].shape[1]

    # Batch tile: multiple of 8 sublanes, capped at `tb` (512 keeps the
    # double-buffered (TB, F) tiles far under every chip's scoped-VMEM default).
    TB = min(tb, max(8, ((B + 7) // 8) * 8))
    n_tiles = pl.cdiv(B, TB)
    B_pad = n_tiles * TB
    if B_pad != B:
        x = jnp.pad(x, ((0, B_pad - B), (0, 0)))

    consts = _pack_consts(params, input_dim, hidden_dim, koopman_dim)
    weights = (params["ew1"], params["ew2"], params["ew3"],
               params["dw1"], params["dw2"], params["dw3"])

    # Cost hint for XLA scheduling around the custom call.
    flops = 2 * B_pad * (input_dim * hidden_dim + hidden_dim * hidden_dim
                         + hidden_dim * koopman_dim + koopman_dim * hidden_dim
                         + hidden_dim * hidden_dim + hidden_dim * input_dim)
    transcendentals = 4 * B_pad * hidden_dim
    bytes_accessed = (2 * B_pad * input_dim * 4
                      + sum(int(w.size) for w in weights) * 4
                      + int(consts.size) * 4)

    def resident(shape):
        # full-array block, constant index map -> DMA'd once, stays in VMEM
        return pl.BlockSpec(shape, lambda i: (0, 0))

    kernel = functools.partial(
        koopman_ae_kernel,
        input_dim=input_dim, hidden_dim=hidden_dim, koopman_dim=koopman_dim,
    )

    out = pl.pallas_call(
        kernel,
        out_shape=jax.ShapeDtypeStruct((B_pad, input_dim), jnp.float32),
        grid=(n_tiles,),
        in_specs=[
            pl.BlockSpec((TB, input_dim), lambda i: (i, 0)),     # x (batch-tiled)
            resident((_CONST_ROWS, _CONST_LANES)),               # packed constants
            resident(weights[0].shape), resident(weights[1].shape),
            resident(weights[2].shape), resident(weights[3].shape),
            resident(weights[4].shape), resident(weights[5].shape),
        ],
        out_specs=pl.BlockSpec((TB, input_dim), lambda i: (i, 0)),
        compiler_params=pltpu.CompilerParams(
            dimension_semantics=("parallel",)),
        cost_estimate=pl.CostEstimate(
            flops=flops, transcendentals=transcendentals,
            bytes_accessed=bytes_accessed),
    )(x, consts, *weights)

    return out[:B] if B_pad != B else out


def init_params(key, input_dim, koopman_dim, hidden_dim):
    """Deterministic init matching nn.Linear default U(-1/sqrt(fan_in), +...)."""
    ks = jax.random.split(key, 12)

    def linear(kw, kb, fan_in, fan_out):
        bound = 1.0 / jnp.sqrt(jnp.asarray(fan_in, jnp.float32))
        w = jax.random.uniform(kw, (fan_in, fan_out), jnp.float32, -bound, bound)
        b = jax.random.uniform(kb, (1, fan_out), jnp.float32, -bound, bound)
        return w, b

    ew1, eb1 = linear(ks[0], ks[1], input_dim, hidden_dim)
    ew2, eb2 = linear(ks[2], ks[3], hidden_dim, hidden_dim)
    ew3, eb3 = linear(ks[4], ks[5], hidden_dim, koopman_dim)
    dw1, db1 = linear(ks[6], ks[7], koopman_dim, hidden_dim)
    dw2, db2 = linear(ks[8], ks[9], hidden_dim, hidden_dim)
    dw3, db3 = linear(ks[10], ks[11], hidden_dim, input_dim)

    return {
        # registered buffers: mu = zeros, std = ones
        "mu": jnp.zeros((1, input_dim), jnp.float32),
        "std": jnp.ones((1, input_dim), jnp.float32),
        "ew1": ew1, "eb1": eb1,
        "ew2": ew2, "eb2": eb2,
        "ew3": ew3, "eb3": eb3,
        # LayerNorm default init: weight = ones, bias = zeros
        "ln_w": jnp.ones((1, koopman_dim), jnp.float32),
        "ln_b": jnp.zeros((1, koopman_dim), jnp.float32),
        "dw1": dw1, "db1": db1,
        "dw2": dw2, "db2": db2,
        "dw3": dw3, "db3": db3,
    }


def reference_forward(x, p):
    """Pure-JAX reference of the same forward pass (for sanity check)."""
    h = (x - p["mu"]) / p["std"]
    h = jnp.tanh(h @ p["ew1"] + p["eb1"])
    h = jnp.tanh(h @ p["ew2"] + p["eb2"])
    z = h @ p["ew3"] + p["eb3"]
    m = jnp.mean(z, axis=-1, keepdims=True)
    v = jnp.mean((z - m) ** 2, axis=-1, keepdims=True)
    z = (z - m) / jnp.sqrt(v + LN_EPS) * p["ln_w"] + p["ln_b"]
    h = jnp.tanh(z @ p["dw1"] + p["db1"])
    h = jnp.tanh(h @ p["dw2"] + p["db2"])
    y = h @ p["dw3"] + p["db3"]
    return p["std"] * y + p["mu"]


if __name__ == "__main__":
    # Small shapes; tb=32 exercises a multi-step batch grid (+ ragged padding).
    B, INPUT_DIM, KOOPMAN_DIM, HIDDEN_DIM = 100, 16, 8, 32

    key = jax.random.PRNGKey(0)
    k_params, k_x = jax.random.split(key)
    params = init_params(k_params, INPUT_DIM, KOOPMAN_DIM, HIDDEN_DIM)
    x = jax.random.normal(k_x, (B, INPUT_DIM), jnp.float32)

    out = koopman_autoencoder_forward(x, params, tb=32)
    out = jax.block_until_ready(out)

    ref = reference_forward(x, params)
    assert out.shape == (B, INPUT_DIM)
    assert jnp.allclose(out, ref, atol=1e-5, rtol=1e-5), "mismatch vs reference"

    print("KERNEL_OK")
</pallas_src>

<mosaic_0001>
module attributes {stable_mosaic.version = 11 : i64} {
  func.func @koopman_ae_kernel(%arg0: i32, %arg1: memref<32x16xf32, #tpu.memory_space<vmem>>, %arg2: memref<16x128xf32, #tpu.memory_space<vmem>>, %arg3: memref<16x32xf32, #tpu.memory_space<vmem>>, %arg4: memref<32x32xf32, #tpu.memory_space<vmem>>, %arg5: memref<32x8xf32, #tpu.memory_space<vmem>>, %arg6: memref<8x32xf32, #tpu.memory_space<vmem>>, %arg7: memref<32x32xf32, #tpu.memory_space<vmem>>, %arg8: memref<32x16xf32, #tpu.memory_space<vmem>>, %arg9: memref<32x16xf32, #tpu.memory_space<vmem>>) attributes {dimension_semantics = [#tpu.dimension_semantics<parallel>], iteration_bounds = array<i64: 4>, scalar_prefetch = 0 : i64, scratch_operands = 0 : i64, tpu.core_type = #tpu.core_type<tc>, window_params = [{transform_indices = @transform_0, window_bounds = array<i64: 32, 16>}, {pipeline_mode = #tpu.pipeline_mode<synchronous>, transform_indices = @transform_1, window_bounds = array<i64: 16, 128>}, {pipeline_mode = #tpu.pipeline_mode<synchronous>, transform_indices = @transform_2, window_bounds = array<i64: 16, 32>}, {pipeline_mode = #tpu.pipeline_mode<synchronous>, transform_indices = @transform_3, window_bounds = array<i64: 32, 32>}, {pipeline_mode = #tpu.pipeline_mode<synchronous>, transform_indices = @transform_4, window_bounds = array<i64: 32, 8>}, {pipeline_mode = #tpu.pipeline_mode<synchronous>, transform_indices = @transform_5, window_bounds = array<i64: 8, 32>}, {pipeline_mode = #tpu.pipeline_mode<synchronous>, transform_indices = @transform_6, window_bounds = array<i64: 32, 32>}, {pipeline_mode = #tpu.pipeline_mode<synchronous>, transform_indices = @transform_7, window_bounds = array<i64: 32, 16>}, {transform_indices = @transform_8, window_bounds = array<i64: 32, 16>}]} {
    %c0 = arith.constant 0 : index
    %c0_0 = arith.constant 0 : index
    %0 = vector.load %arg1[%c0, %c0_0] : memref<32x16xf32, #tpu.memory_space<vmem>>, vector<32x16xf32>
    %c0_1 = arith.constant 0 : index
    %c0_2 = arith.constant 0 : index
    %1 = vector.load %arg2[%c0_1, %c0_2] : memref<16x128xf32, #tpu.memory_space<vmem>>, vector<16x128xf32>
    %2 = vector.extract_strided_slice %1 {offsets = [0, 0], sizes = [1, 16], strides = [1, 1]} : vector<16x128xf32> to vector<1x16xf32>
    %3 = vector.extract_strided_slice %1 {offsets = [1, 0], sizes = [1, 16], strides = [1, 1]} : vector<16x128xf32> to vector<1x16xf32>
    %4 = vector.extract_strided_slice %1 {offsets = [2, 0], sizes = [1, 32], strides = [1, 1]} : vector<16x128xf32> to vector<1x32xf32>
    %5 = vector.extract_strided_slice %1 {offsets = [3, 0], sizes = [1, 32], strides = [1, 1]} : vector<16x128xf32> to vector<1x32xf32>
    %6 = vector.extract_strided_slice %1 {offsets = [4, 0], sizes = [1, 8], strides = [1, 1]} : vector<16x128xf32> to vector<1x8xf32>
    %7 = vector.extract_strided_slice %1 {offsets = [5, 0], sizes = [1, 8], strides = [1, 1]} : vector<16x128xf32> to vector<1x8xf32>
    %8 = vector.extract_strided_slice %1 {offsets = [6, 0], sizes = [1, 8], strides = [1, 1]} : vector<16x128xf32> to vector<1x8xf32>
    %9 = vector.extract_strided_slice %1 {offsets = [7, 0], sizes = [1, 32], strides = [1, 1]} : vector<16x128xf32> to vector<1x32xf32>
    %10 = vector.extract_strided_slice %1 {offsets = [8, 0], sizes = [1, 32], strides = [1, 1]} : vector<16x128xf32> to vector<1x32xf32>
    %11 = vector.extract_strided_slice %1 {offsets = [9, 0], sizes = [1, 16], strides = [1, 1]} : vector<16x128xf32> to vector<1x16xf32>
    %12 = tpu.reciprocal %3 : vector<1x16xf32> -> vector<1x16xf32>
    %13 = vector.broadcast %2 : vector<1x16xf32> to vector<32x16xf32>
    %14 = arith.subf %0, %13 : vector<32x16xf32>
    %15 = vector.broadcast %12 : vector<1x16xf32> to vector<32x16xf32>
    %16 = arith.mulf %14, %15 : vector<32x16xf32>
    %c0_3 = arith.constant 0 : index
    %c0_4 = arith.constant 0 : index
    %17 = vector.load %arg3[%c0_3, %c0_4] : memref<16x32xf32, #tpu.memory_space<vmem>>, vector<16x32xf32>
    %cst = arith.constant dense<0.000000e+00> : vector<32x32xf32>
    %18 = tpu.matmul %16, %17, %cst {dimension_numbers = #tpu.dot_dimension_numbers<[1], [0], [0], [1], [0, 0, 1, 1], [], []>} : vector<32x16xf32>, vector<16x32xf32>, vector<32x32xf32> -> vector<32x32xf32>
    %19 = vector.broadcast %4 : vector<1x32xf32> to vector<32x32xf32>
    %20 = arith.addf %18, %19 : vector<32x32xf32>
    %21 = math.tanh %20 : vector<32x32xf32>
    %c0_5 = arith.constant 0 : index
    %c0_6 = arith.constant 0 : index
    %22 = vector.load %arg4[%c0_5, %c0_6] : memref<32x32xf32, #tpu.memory_space<vmem>>, vector<32x32xf32>
    %cst_7 = arith.constant dense<0.000000e+00> : vector<32x32xf32>
    %23 = tpu.matmul %21, %22, %cst_7 {dimension_numbers = #tpu.dot_dimension_numbers<[1], [0], [0], [1], [0, 0, 1, 1], [], []>} : vector<32x32xf32>, vector<32x32xf32>, vector<32x32xf32> -> vector<32x32xf32>
    %24 = vector.broadcast %5 : vector<1x32xf32> to vector<32x32xf32>
    %25 = arith.addf %23, %24 : vector<32x32xf32>
    %26 = math.tanh %25 : vector<32x32xf32>
    %c0_8 = arith.constant 0 : index
    %c0_9 = arith.constant 0 : index
    %27 = vector.load %arg5[%c0_8, %c0_9] : memref<32x8xf32, #tpu.memory_space<vmem>>, vector<32x8xf32>
    %cst_10 = arith.constant dense<0.000000e+00> : vector<32x8xf32>
    %28 = tpu.matmul %26, %27, %cst_10 {dimension_numbers = #tpu.dot_dimension_numbers<[1], [0], [0], [1], [0, 0, 1, 1], [], []>} : vector<32x32xf32>, vector<32x8xf32>, vector<32x8xf32> -> vector<32x8xf32>
    %29 = vector.broadcast %6 : vector<1x8xf32> to vector<32x8xf32>
    %30 = arith.addf %28, %29 : vector<32x8xf32>
    %cst_11 = arith.constant dense<0.000000e+00> : vector<32xf32>
    %31 = vector.multi_reduction <add>, %30, %cst_11 [1] : vector<32x8xf32> to vector<32xf32>
    %32 = vector.shape_cast %31 : vector<32xf32> to vector<32x1xf32>
    %cst_12 = arith.constant 8.000000e+00 : f32
    %33 = vector.broadcast %cst_12 : f32 to vector<32x1xf32>
    %34 = arith.divf %32, %33 : vector<32x1xf32>
    %35 = vector.broadcast %34 : vector<32x1xf32> to vector<32x8xf32>
    %36 = arith.subf %30, %35 : vector<32x8xf32>
    %37 = arith.mulf %36, %36 : vector<32x8xf32>
    %cst_13 = arith.constant dense<0.000000e+00> : vector<32xf32>
    %38 = vector.multi_reduction <add>, %37, %cst_13 [1] : vector<32x8xf32> to vector<32xf32>
    %39 = vector.shape_cast %38 : vector<32xf32> to vector<32x1xf32>
    %cst_14 = arith.constant 8.000000e+00 : f32
    %40 = vector.broadcast %cst_14 : f32 to vector<32x1xf32>
    %41 = arith.divf %39, %40 : vector<32x1xf32>
    %cst_15 = arith.constant 9.99999974E-6 : f32
    %42 = vector.broadcast %cst_15 : f32 to vector<32x1xf32>
    %43 = arith.addf %41, %42 : vector<32x1xf32>
    %44 = math.rsqrt %43 : vector<32x1xf32>
    %45 = vector.broadcast %44 : vector<32x1xf32> to vector<32x8xf32>
    %46 = arith.mulf %36, %45 : vector<32x8xf32>
    %47 = vector.broadcast %7 : vector<1x8xf32> to vector<32x8xf32>
    %48 = arith.mulf %46, %47 : vector<32x8xf32>
    %49 = vector.broadcast %8 : vector<1x8xf32> to vector<32x8xf32>
    %50 = arith.addf %48, %49 : vector<32x8xf32>
    %c0_16 = arith.constant 0 : index
    %c0_17 = arith.constant 0 : index
    %51 = vector.load %arg6[%c0_16, %c0_17] : memref<8x32xf32, #tpu.memory_space<vmem>>, vector<8x32xf32>
    %cst_18 = arith.constant dense<0.000000e+00> : vector<32x32xf32>
    %52 = tpu.matmul %50, %51, %cst_18 {dimension_numbers = #tpu.dot_dimension_numbers<[1], [0], [0], [1], [0, 0, 1, 1], [], []>} : vector<32x8xf32>, vector<8x32xf32>, vector<32x32xf32> -> vector<32x32xf32>
    %53 = vector.broadcast %9 : vector<1x32xf32> to vector<32x32xf32>
    %54 = arith.addf %52, %53 : vector<32x32xf32>
    %55 = math.tanh %54 : vector<32x32xf32>
    %c0_19 = arith.constant 0 : index
    %c0_20 = arith.constant 0 : index
    %56 = vector.load %arg7[%c0_19, %c0_20] : memref<32x32xf32, #tpu.memory_space<vmem>>, vector<32x32xf32>
    %cst_21 = arith.constant dense<0.000000e+00> : vector<32x32xf32>
    %57 = tpu.matmul %55, %56, %cst_21 {dimension_numbers = #tpu.dot_dimension_numbers<[1], [0], [0], [1], [0, 0, 1, 1], [], []>} : vector<32x32xf32>, vector<32x32xf32>, vector<32x32xf32> -> vector<32x32xf32>
    %58 = vector.broadcast %10 : vector<1x32xf32> to vector<32x32xf32>
    %59 = arith.addf %57, %58 : vector<32x32xf32>
    %60 = math.tanh %59 : vector<32x32xf32>
    %c0_22 = arith.constant 0 : index
    %c0_23 = arith.constant 0 : index
    %61 = vector.load %arg8[%c0_22, %c0_23] : memref<32x16xf32, #tpu.memory_space<vmem>>, vector<32x16xf32>
    %cst_24 = arith.constant dense<0.000000e+00> : vector<32x16xf32>
    %62 = tpu.matmul %60, %61, %cst_24 {dimension_numbers = #tpu.dot_dimension_numbers<[1], [0], [0], [1], [0, 0, 1, 1], [], []>} : vector<32x32xf32>, vector<32x16xf32>, vector<32x16xf32> -> vector<32x16xf32>
    %63 = vector.broadcast %11 : vector<1x16xf32> to vector<32x16xf32>
    %64 = arith.addf %62, %63 : vector<32x16xf32>
    %65 = vector.broadcast %3 : vector<1x16xf32> to vector<32x16xf32>
    %66 = arith.mulf %65, %64 : vector<32x16xf32>
    %67 = vector.broadcast %2 : vector<1x16xf32> to vector<32x16xf32>
    %68 = arith.addf %66, %67 : vector<32x16xf32>
    %c0_25 = arith.constant 0 : index
    %c0_26 = arith.constant 0 : index
    %69 = vector.load %arg9[%c0_25, %c0_26] : memref<32x16xf32, #tpu.memory_space<vmem>>, vector<32x16xf32>
    tpu.vector_store %arg9[%c0_25, %c0_26], %68 {strides = array<i32>} : memref<32x16xf32, #tpu.memory_space<vmem>>, vector<32x16xf32>,
    return
  }
  func.func @transform_0(%arg0: i32) -> (i32, i32) {
    %c0_i32 = arith.constant 0 : i32
    %c0_i32_0 = arith.constant 0 : i32
    return %arg0, %c0_i32 : i32, i32
  }
  func.func @transform_1(%arg0: i32) -> (i32, i32) {
    %c0_i32 = arith.constant 0 : i32
    %c0_i32_0 = arith.constant 0 : i32
    %c0_i32_1 = arith.constant 0 : i32
    return %c0_i32, %c0_i32_0 : i32, i32
  }
  func.func @transform_2(%arg0: i32) -> (i32, i32) {
    %c0_i32 = arith.constant 0 : i32
    %c0_i32_0 = arith.constant 0 : i32
    %c0_i32_1 = arith.constant 0 : i32
    return %c0_i32, %c0_i32_0 : i32, i32
  }
  func.func @transform_3(%arg0: i32) -> (i32, i32) {
    %c0_i32 = arith.constant 0 : i32
    %c0_i32_0 = arith.constant 0 : i32
    %c0_i32_1 = arith.constant 0 : i32
    return %c0_i32, %c0_i32_0 : i32, i32
  }
  func.func @transform_4(%arg0: i32) -> (i32, i32) {
    %c0_i32 = arith.constant 0 : i32
    %c0_i32_0 = arith.constant 0 : i32
    %c0_i32_1 = arith.constant 0 : i32
    return %c0_i32, %c0_i32_0 : i32, i32
  }
  func.func @transform_5(%arg0: i32) -> (i32, i32) {
    %c0_i32 = arith.constant 0 : i32
    %c0_i32_0 = arith.constant 0 : i32
    %c0_i32_1 = arith.constant 0 : i32
    return %c0_i32, %c0_i32_0 : i32, i32
  }
  func.func @transform_6(%arg0: i32) -> (i32, i32) {
    %c0_i32 = arith.constant 0 : i32
    %c0_i32_0 = arith.constant 0 : i32
    %c0_i32_1 = arith.constant 0 : i32
    return %c0_i32, %c0_i32_0 : i32, i32
  }
  func.func @transform_7(%arg0: i32) -> (i32, i32) {
    %c0_i32 = arith.constant 0 : i32
    %c0_i32_0 = arith.constant 0 : i32
    %c0_i32_1 = arith.constant 0 : i32
    return %c0_i32, %c0_i32_0 : i32, i32
  }
  func.func @transform_8(%arg0: i32) -> (i32, i32) {
    %c0_i32 = arith.constant 0 : i32
    %c0_i32_0 = arith.constant 0 : i32
    return %arg0, %c0_i32 : i32, i32
  }
}

</mosaic_0001>

<llo_original>
// kernel: koopman_autoencoder_forward.1
$region0: #{koopman_autoencoder_forward.1}
  #allocation0 [shape = 'u32[]', space=smem, size = 0x4, offset = 0x4, fixed_abs, tag = 'smem constant byte address 0x4 - core index']
  #allocation1 [shape = 'u32[144,128]{1,0:T(1,128)}', space=vmem, size = 0x12000, scoped, tag = 'internal scratch']
  %s0 = inlined_call_operand.vmem [shape: f32[128,16], index: 0, kind: input, shape index: {}]
  %s1 = inlined_call_operand.vmem [shape: f32[16,128], index: 1, kind: input, shape index: {}]
  %s2 = inlined_call_operand.vmem [shape: f32[16,32], index: 2, kind: input, shape index: {}]
  %s3 = inlined_call_operand.vmem [shape: f32[32,32], index: 3, kind: input, shape index: {}]
  %s4 = inlined_call_operand.vmem [shape: f32[32,8], index: 4, kind: input, shape index: {}]
  %s5 = inlined_call_operand.vmem [shape: f32[8,32], index: 5, kind: input, shape index: {}]
  %s6 = inlined_call_operand.vmem [shape: f32[32,32], index: 6, kind: input, shape index: {}]
  %s7 = inlined_call_operand.vmem [shape: f32[32,16], index: 7, kind: input, shape index: {}]
  %s8 = inlined_call_operand.vmem [shape: f32[128,16], index: 8, kind: output, shape index: {}]
  %s9 = sld [smem:[#allocation0]]
  $region65: #{koopman_autoencoder_forward.1} parent=0
    _
  %s11 = ssub.s32 1, %s9
  %s12 = scalar_select 0, %s11, %s9
  loop: start=0, step=1, limit=6
  $region2: #{koopman_autoencoder_forward.1} parent=0 // loop_pre_header
    _
  $region3: #{koopman_autoencoder_forward.1} parent=0 // loop_header
    %s14 = sphi 0, %s18
    %p15 = scmp.ge.s32.totalorder %s14, 6
    %s24 = sphi 0, %s26
    %s27 = sphi 0, %s24
    %s28 = sphi 0, %s27
    %s44 = sphi 0, %s28
    %s48 = sphi 0, %s48
    %s50 = sphi 0, %s48
    %s51 = sphi 0, %s50
    %s65 = sphi 0, %s51
    %s69 = sphi 0, %s69
    %s71 = sphi 0, %s69
    %s72 = sphi 0, %s71
    %s86 = sphi 0, %s72
    %s90 = sphi 0, %s90
    %s92 = sphi 0, %s90
    %s93 = sphi 0, %s92
    %s107 = sphi 0, %s93
    %s111 = sphi 0, %s111
    %s113 = sphi 0, %s111
    %s114 = sphi 0, %s113
    %s128 = sphi 0, %s114
    %s132 = sphi 0, %s132
    %s134 = sphi 0, %s132
    %s135 = sphi 0, %s134
    %s149 = sphi 0, %s135
    %s153 = sphi 0, %s153
    %s155 = sphi 0, %s153
    %s156 = sphi 0, %s155
    %s170 = sphi 0, %s156
    %s174 = sphi 0, %s174
    %s176 = sphi 0, %s174
    %s177 = sphi 0, %s176
    %s191 = sphi 0, %s177
    %s197 = sphi 0, %s199
    %s200 = sphi 0, %s197
    %s201 = sphi 0, %s200
    %s217 = sphi 0, %s201
  $region4: #{koopman_autoencoder_forward.1} parent=0 // loop_header_branch
    %17 = sbr.rel (%p15) target = $region8
  $region5: #{koopman_autoencoder_forward.1} parent=0 // loop_body
    %s19 = ssub.s32 %s14, 1
    %s20 = ssub.s32 %s14, 2
    %s21 = sadd.s32 %s14, 1
    %s22 = ssub.s32 %s14, %s21
    %p23 = scmp.eq.s32.totalorder %s22, 0
    %s25 = sadd.s32 %s24, 1
    %s26 = scalar_select %p23, %s24, %s25
    %p29 = pneg %p23
    %p30 = scmp.eq.s32.totalorder %s14, 3
    %p31 = por %p29, %p30
    %p32 = scmp.ne.s32.totalorder %s24, %s27
    %p33 = scmp.eq.s32.totalorder %s14, 0
    %p34 = por %p32, %p33
    %p35 = scmp.ne.s32.totalorder %s24, %s27
    %p36 = scmp.eq.s32.totalorder %s19, 3
    %p37 = por %p35, %p36
    %p38 = scmp.ne.s32.totalorder %s27, %s28
    %p39 = scmp.eq.s32.totalorder %s19, 0
    %p40 = por %p38, %p39
    %p41 = scmp.ne.s32.totalorder %s27, %s28
    %p42 = scmp.eq.s32.totalorder %s20, 3
    %p43 = por %p41, %p42
    %p45 = scmp.ne.s32.totalorder %s28, %s44
    %p46 = scmp.eq.s32.totalorder %s20, 0
    %p47 = por %p45, %p46
    %s49 = sadd.s32 %s48, 1
    %p52 = scmp.eq.s32.totalorder %s14, 3
    %p53 = scmp.ne.s32.totalorder %s48, %s50
    %p54 = scmp.eq.s32.totalorder %s14, 0
    %p55 = por %p53, %p54
    %p56 = scmp.ne.s32.totalorder %s48, %s50
    %p57 = scmp.eq.s32.totalorder %s19, 3
    %p58 = por %p56, %p57
    %p59 = scmp.ne.s32.totalorder %s50, %s51
    %p60 = scmp.eq.s32.totalorder %s19, 0
    %p61 = por %p59, %p60
    %p62 = scmp.ne.s32.totalorder %s50, %s51
    %p63 = scmp.eq.s32.totalorder %s20, 3
    %p64 = por %p62, %p63
    %p66 = scmp.ne.s32.totalorder %s51, %s65
    %p67 = scmp.eq.s32.totalorder %s20, 0
    %p68 = por %p66, %p67
    %s70 = sadd.s32 %s69, 1
    %p73 = scmp.eq.s32.totalorder %s14, 3
    %p74 = scmp.ne.s32.totalorder %s69, %s71
    %p75 = scmp.eq.s32.totalorder %s14, 0
    %p76 = por %p74, %p75
    %p77 = scmp.ne.s32.totalorder %s69, %s71
    %p78 = scmp.eq.s32.totalorder %s19, 3
    %p79 = por %p77, %p78
    %p80 = scmp.ne.s32.totalorder %s71, %s72
    %p81 = scmp.eq.s32.totalorder %s19, 0
    %p82 = por %p80, %p81
    %p83 = scmp.ne.s32.totalorder %s71, %s72
    %p84 = scmp.eq.s32.totalorder %s20, 3
    %p85 = por %p83, %p84
    %p87 = scmp.ne.s32.totalorder %s72, %s86
    %p88 = scmp.eq.s32.totalorder %s20, 0
    %p89 = por %p87, %p88
    %s91 = sadd.s32 %s90, 1
    %p94 = scmp.eq.s32.totalorder %s14, 3
    %p95 = scmp.ne.s32.totalorder %s90, %s92
    %p96 = scmp.eq.s32.totalorder %s14, 0
    %p97 = por %p95, %p96
    %p98 = scmp.ne.s32.totalorder %s90, %s92
    %p99 = scmp.eq.s32.totalorder %s19, 3
    %p100 = por %p98, %p99
    %p101 = scmp.ne.s32.totalorder %s92, %s93
    %p102 = scmp.eq.s32.totalorder %s19, 0
    %p103 = por %p101, %p102
    %p104 = scmp.ne.s32.totalorder %s92, %s93
    %p105 = scmp.eq.s32.totalorder %s20, 3
    %p106 = por %p104, %p105
    %p108 = scmp.ne.s32.totalorder %s93, %s107
    %p109 = scmp.eq.s32.totalorder %s20, 0
    %p110 = por %p108, %p109
    %s112 = sadd.s32 %s111, 1
    %p115 = scmp.eq.s32.totalorder %s14, 3
    %p116 = scmp.ne.s32.totalorder %s111, %s113
    %p117 = scmp.eq.s32.totalorder %s14, 0
    %p118 = por %p116, %p117
    %p119 = scmp.ne.s32.totalorder %s111, %s113
    %p120 = scmp.eq.s32.totalorder %s19, 3
    %p121 = por %p119, %p120
    %p122 = scmp.ne.s32.totalorder %s113, %s114
    %p123 = scmp.eq.s32.totalorder %s19, 0
    %p124 = por %p122, %p123
    %p125 = scmp.ne.s32.totalorder %s113, %s114
    %p126 = scmp.eq.s32.totalorder %s20, 3
    %p127 = por %p125, %p126
    %p129 = scmp.ne.s32.totalorder %s114, %s128
    %p130 = scmp.eq.s32.totalorder %s20, 0
    %p131 = por %p129, %p130
    %s133 = sadd.s32 %s132, 1
    %p136 = scmp.eq.s32.totalorder %s14, 3
    %p137 = scmp.ne.s32.totalorder %s132, %s134
    %p138 = scmp.eq.s32.totalorder %s14, 0
    %p139 = por %p137, %p138
    %p140 = scmp.ne.s32.totalorder %s132, %s134
    %p141 = scmp.eq.s32.totalorder %s19, 3
    %p142 = por %p140, %p141
    %p143 = scmp.ne.s32.totalorder %s134, %s135
    %p144 = scmp.eq.s32.totalorder %s19, 0
    %p145 = por %p143, %p144
    %p146 = scmp.ne.s32.totalorder %s134, %s135
    %p147 = scmp.eq.s32.totalorder %s20, 3
    %p148 = por %p146, %p147
    %p150 = scmp.ne.s32.totalorder %s135, %s149
    %p151 = scmp.eq.s32.totalorder %s20, 0
    %p152 = por %p150, %p151
    %s154 = sadd.s32 %s153, 1
    %p157 = scmp.eq.s32.totalorder %s14, 3
    %p158 = scmp.ne.s32.totalorder %s153, %s155
    %p159 = scmp.eq.s32.totalorder %s14, 0
    %p160 = por %p158, %p159
    %p161 = scmp.ne.s32.totalorder %s153, %s155
    %p162 = scmp.eq.s32.totalorder %s19, 3
    %p163 = por %p161, %p162
    %p164 = scmp.ne.s32.totalorder %s155, %s156
    %p165 = scmp.eq.s32.totalorder %s19, 0
    %p166 = por %p164, %p165
    %p167 = scmp.ne.s32.totalorder %s155, %s156
    %p168 = scmp.eq.s32.totalorder %s20, 3
    %p169 = por %p167, %p168
    %p171 = scmp.ne.s32.totalorder %s156, %s170
    %p172 = scmp.eq.s32.totalorder %s20, 0
    %p173 = por %p171, %p172
    %s175 = sadd.s32 %s174, 1
    %p178 = scmp.eq.s32.totalorder %s14, 3
    %p179 = scmp.ne.s32.totalorder %s174, %s176
    %p180 = scmp.eq.s32.totalorder %s14, 0
    %p181 = por %p179, %p180
    %p182 = scmp.ne.s32.totalorder %s174, %s176
    %p183 = scmp.eq.s32.totalorder %s19, 3
    %p184 = por %p182, %p183
    %p185 = scmp.ne.s32.totalorder %s176, %s177
    %p186 = scmp.eq.s32.totalorder %s19, 0
    %p187 = por %p185, %p186
    %p188 = scmp.ne.s32.totalorder %s176, %s177
    %p189 = scmp.eq.s32.totalorder %s20, 3
    %p190 = por %p188, %p189
    %p192 = scmp.ne.s32.totalorder %s177, %s191
    %p193 = scmp.eq.s32.totalorder %s20, 0
    %p194 = por %p192, %p193
    %s195 = ssub.s32 %s14, %s21
    %p196 = scmp.eq.s32.totalorder %s195, 0
    %s198 = sadd.s32 %s197, 1
    %s199 = scalar_select %p196, %s197, %s198
    %p202 = pneg %p196
    %p203 = scmp.eq.s32.totalorder %s14, 3
    %p204 = por %p202, %p203
    %p205 = scmp.ne.s32.totalorder %s197, %s200
    %p206 = scmp.eq.s32.totalorder %s14, 0
    %p207 = por %p205, %p206
    %p208 = scmp.ne.s32.totalorder %s197, %s200
    %p209 = scmp.eq.s32.totalorder %s19, 3
    %p210 = por %p208, %p209
    %p211 = scmp.ne.s32.totalorder %s200, %s201
    %p212 = scmp.eq.s32.totalorder %s19, 0
    %p213 = por %p211, %p212
    %p214 = scmp.ne.s32.totalorder %s200, %s201
    %p215 = scmp.eq.s32.totalorder %s20, 3
    %p216 = por %p214, %p215
    %p218 = scmp.ne.s32.totalorder %s201, %s217
    %p219 = scmp.eq.s32.totalorder %s20, 0
    %p220 = por %p218, %p219
    %p221 = scmp.le.s32.totalorder 1, %s14
    %p222 = scmp.lt.s32.totalorder %s14, 5
    %p223 = pnand %p221, %p222
    %p224 = pneg %p223
    // Predicated region
    $region9: #{koopman_autoencoder_forward.1} parent=5 // pred_check
      _
    $region10: #{koopman_autoencoder_forward.1} parent=5 // pred_check_branch
      %226 = sbr.rel (%p223) target = $region12
    $region11: #{koopman_autoencoder_forward.1} parent=5 // pred_region
      %s227 = ssub.s32 %s14, 1
      // Predicated region
      $region13: #{koopman_autoencoder_forward.1} parent=11 // pred_check
        %p228 = pneg %p61
      $region14: #{koopman_autoencoder_forward.1} parent=11 // pred_check_branch
        %230 = sbr.rel (%p228) target = $region16
      $region15: #{koopman_autoencoder_forward.1} parent=11 // pred_region
        _
      $region16: #{koopman_autoencoder_forward.1} parent=11 // pred_fallthru
        _
      // Predicated region
      $region17: #{koopman_autoencoder_forward.1} parent=11 // pred_check
        %p231 = pneg %p82
      $region18: #{koopman_autoencoder_forward.1} parent=11 // pred_check_branch
        %233 = sbr.rel (%p231) target = $region20
      $region19: #{koopman_autoencoder_forward.1} parent=11 // pred_region
        _
      $region20: #{koopman_autoencoder_forward.1} parent=11 // pred_fallthru
        _
      // Predicated region
      $region21: #{koopman_autoencoder_forward.1} parent=11 // pred_check
        %p234 = pneg %p103
      $region22: #{koopman_autoencoder_forward.1} parent=11 // pred_check_branch
        %236 = sbr.rel (%p234) target = $region24
      $region23: #{koopman_autoencoder_forward.1} parent=11 // pred_region
        _
      $region24: #{koopman_autoencoder_forward.1} parent=11 // pred_fallthru
        _
      // Predicated region
      $region25: #{koopman_autoencoder_forward.1} parent=11 // pred_check
        %p237 = pneg %p124
      $region26: #{koopman_autoencoder_forward.1} parent=11 // pred_check_branch
        %239 = sbr.rel (%p237) target = $region28
      $region27: #{koopman_autoencoder_forward.1} parent=11 // pred_region
        _
      $region28: #{koopman_autoencoder_forward.1} parent=11 // pred_fallthru
        _
      // Predicated region
      $region29: #{koopman_autoencoder_forward.1} parent=11 // pred_check
        %p240 = pneg %p145
      $region30: #{koopman_autoencoder_forward.1} parent=11 // pred_check_branch
        %242 = sbr.rel (%p240) target = $region32
      $region31: #{koopman_autoencoder_forward.1} parent=11 // pred_region
        _
      $region32: #{koopman_autoencoder_forward.1} parent=11 // pred_fallthru
        _
      // Predicated region
      $region33: #{koopman_autoencoder_forward.1} parent=11 // pred_check
        %p243 = pneg %p166
      $region34: #{koopman_autoencoder_forward.1} parent=11 // pred_check_branch
        %245 = sbr.rel (%p243) target = $region36
      $region35: #{koopman_autoencoder_forward.1} parent=11 // pred_region
        _
      $region36: #{koopman_autoencoder_forward.1} parent=11 // pred_fallthru
        _
      // Predicated region
      $region37: #{koopman_autoencoder_forward.1} parent=11 // pred_check
        %p246 = pneg %p187
      $region38: #{koopman_autoencoder_forward.1} parent=11 // pred_check_branch
        %248 = sbr.rel (%p246) target = $region40
      $region39: #{koopman_autoencoder_forward.1} parent=11 // pred_region
        _
      $region40: #{koopman_autoencoder_forward.1} parent=11 // pred_fallthru
        _
    $region12: #{koopman_autoencoder_forward.1} parent=5 // pred_fallthru
      _
    %p249 = scmp.lt.s32.totalorder %s14, 4
    // Predicated region
    $region41: #{koopman_autoencoder_forward.1} parent=5 // pred_check
      %p250 = pneg %p249
    $region42: #{koopman_autoencoder_forward.1} parent=5 // pred_check_branch
      %252 = sbr.rel (%p250) target = $region44
    $region43: #{koopman_autoencoder_forward.1} parent=5 // pred_region
      // Predicated region
      $region45: #{koopman_autoencoder_forward.1} parent=43 // pred_check
        %p253 = pneg %p34
      $region46: #{koopman_autoencoder_forward.1} parent=43 // pred_check_branch
        %255 = sbr.rel (%p253) target = $region48
      $region47: #{koopman_autoencoder_forward.1} parent=43 // pred_region
        %s256 = smul.u32 4, %s14
        %p257 = scmp.lt.s32.totalorder %s256, 15
        %s258 = scalar_select %p257, %s256, 15
        %s259 = smul.addr %s258, 8
        %s260 = scalar_lea.vmem %s0, %s259
        %s261 = smul.u32 4, %s14
      $region48: #{koopman_autoencoder_forward.1} parent=43 // pred_fallthru
        _
    $region44: #{koopman_autoencoder_forward.1} parent=5 // pred_fallthru
      _
    %p262 = scmp.le.s32.totalorder 1, %s14
    %p263 = scmp.lt.s32.totalorder %s14, 5
    %p264 = pnand %p262, %p263
    %p265 = pneg %p264
    // Predicated region
    $region49: #{koopman_autoencoder_forward.1} parent=5 // pred_check
      _
    $region50: #{koopman_autoencoder_forward.1} parent=5 // pred_check_branch
      %267 = sbr.rel (%p264) target = $region52
    $region51: #{koopman_autoencoder_forward.1} parent=5 // pred_region
      %s268 = ssub.s32 %s14, 1
      %s269 = smul.u32 4, %s19
      %p270 = scmp.lt.s32.totalorder %s269, 15
      %s271 = scalar_select %p270, %s269, 15
      %s272 = smul.addr %s271, 8
      %s273 = scalar_lea.vmem %s0, %s272
      %p274 = pneg %p40
      %p275 = pneg %p37
      %p276 = pneg %p61
      %p277 = pneg %p58
      %p278 = pneg %p82
      %p279 = pneg %p79
      %p280 = pneg %p103
      %p281 = pneg %p100
      %p282 = pneg %p124
      %p283 = pneg %p121
      %p284 = pneg %p145
      %p285 = pneg %p142
      %p286 = pneg %p166
      %p287 = pneg %p163
      %p288 = pneg %p187
      %p289 = pneg %p184
      %p290 = pneg %p213
      %p291 = pneg %p210
      %s292 = smul.u32 4, %s19
      %p293 = scmp.lt.s32.totalorder %s292, 15
      %s294 = scalar_select %p293, %s292, 15
      %s295 = smul.addr %s294, 8
      %s296 = scalar_lea.vmem %s8, %s295
      %s297 = smul.u32 4, %s19
      %p298 = scmp.lt.s32.totalorder %s297, 15
      %s299 = scalar_select %p298, %s297, 15
      %s300 = smul.addr %s299, 8
      %s301 = scalar_lea.vmem %s0, %s300
      %s302 = smul.u32 4, %s19
      %s303 = smul.u32 4, %s19
      %p304 = scmp.lt.s32.totalorder %s303, 15
      %s305 = scalar_select %p304, %s303, 15
      %s306 = smul.addr %s305, 8
      %s307 = scalar_lea.vmem %s8, %s306
      %s308 = smul.u32 4, %s19
      %v309 = vld [vmem:[%s301] sm:$0xff]
      %v310 = vld [vmem:[%s301 + $0x8] sm:$0xff]
      %v311 = vld [vmem:[%s301 + $0x10] sm:$0xff]
      %v312 = vld [vmem:[%s301 + $0x18] sm:$0xff]
      %v313 = vld [vmem:[%s1] sm:$0xff]
      %v314 = vld [vmem:[%s1 + $0x8] sm:$0xff]
      %v315 = vrcp.pop %v313
      %v316 = vlaneseq
      %v317 = vshrl.u32 %v316, 7
      %v318 = vsub.s32 0, %v317
      %v319 = vrot.slane %v313, %v318
      %v320 = vsub.f32 %v309, %v319
      %v321 = vsub.f32 %v310, %v319
      %v322 = vsub.f32 %v311, %v319
      %v323 = vsub.f32 %v312, %v319
      %v324 = vlaneseq
      %v325 = vshrl.u32 %v324, 7
      %v326 = vsub.s32 1, %v325
      %v327 = vrot.slane %v315, %v326
      %v328 = vmul.f32 %v320, %v327
      %v329 = vmul.f32 %v321, %v327
      %v330 = vmul.f32 %v322, %v327
      %v331 = vmul.f32 %v323, %v327
      %v332 = vld [vmem:[%s2] sm:$0xff]
      %v333 = vld [vmem:[%s2 + $0x8] sm:$0xff]
      %v334 = vlaneseq
      %v335 = vshrl.u32 %v334, 7
      %v336 = vsub.s32 2, %v335
      %v337 = vrot.slane %v313, %v336
      %vm338 = vcmask 130048
      %v340 = vsel %vm338, %v328, 0
      %v343 = vsel %vm338, %v329, 0
      %v346 = vsel %vm338, %v330, 0
      %v349 = vsel %vm338, %v331, 0
      %351 = vmatprep.subr.mxu0 0.0
      %352 = vmatpush1.msra.mxu0 %v332
      %353 = vmatprep.subr.mxu0 0.0
      %354 = vmatpush1.msra.mxu0 %v333
      %355 = vmatprep.subr.mxu0 0.0
      %356 = vmatpush1.msra.mxu0 0.0
      %357 = vmatprep.subr.mxu0 0.0
      %358 = vmatpush1.msra.mxu0 0.0
      %359 = vmatprep.subr.mxu0 0.0
      %360 = vmatpush1.msra.mxu0 0.0
      %361 = vmatprep.subr.mxu0 0.0
      %362 = vmatpush1.msra.mxu0 0.0
      %363 = vmatprep.subr.mxu0 0.0
      %364 = vmatpush1.msra.mxu0 0.0
      %365 = vmatprep.subr.mxu0 0.0
      %366 = vmatpush1.msra.mxu0 0.0
      %367 = vmatprep.subr.mxu0 0.0
      %368 = vmatpush1.msra.mxu0 0.0
      %369 = vmatprep.subr.mxu0 0.0
      %370 = vmatpush1.msra.mxu0 0.0
      %371 = vmatprep.subr.mxu0 0.0
      %372 = vmatpush1.msra.mxu0 0.0
      %373 = vmatprep.subr.mxu0 0.0
      %374 = vmatpush1.msra.mxu0 0.0
      %375 = vmatprep.subr.mxu0 0.0
      %376 = vmatpush1.msra.mxu0 0.0
      %377 = vmatprep.subr.mxu0 0.0
      %378 = vmatpush1.msra.mxu0 0.0
      %379 = vmatprep.subr.mxu0 0.0
      %380 = vmatpush1.msra.mxu0 0.0
      %381 = vmatprep.subr.mxu0 0.0
      %382 = vmatpush1.msra.mxu0 0.0
      %383 = vmatprep.subr.mxu0 0.0
      %384 = vmatpush1.msra.mxu0 0.0
      %385 = vmatprep.subr.mxu0 0.0
      %386 = vmatpush1.msra.mxu0 0.0
      %387 = vmatprep.subr.mxu0 0.0
      %388 = vmatpush1.msra.mxu0 0.0
      %389 = vmatprep.subr.mxu0 0.0
      %390 = vmatpush1.msra.mxu0 0.0
      %391 = vmatprep.subr.mxu0 0.0
      %392 = vmatpush1.msra.mxu0 0.0
      %393 = vmatprep.subr.mxu0 0.0
      %394 = vmatpush1.msra.mxu0 0.0
      %395 = vmatprep.subr.mxu0 0.0
      %396 = vmatpush1.msra.mxu0 0.0
      %397 = vmatprep.subr.mxu0 0.0
      %398 = vmatpush1.msra.mxu0 0.0
      %399 = vmatprep.subr.mxu0 0.0
      %400 = vmatpush1.msra.mxu0 0.0
      %401 = vmatprep.subr.mxu0 0.0
      %402 = vmatpush1.msra.mxu0 0.0
      %403 = vmatprep.subr.mxu0 0.0
      %404 = vmatpush1.msra.mxu0 0.0
      %405 = vmatprep.subr.mxu0 0.0
      %406 = vmatpush1.msra.mxu0 0.0
      %407 = vmatprep.subr.mxu0 0.0
      %408 = vmatpush1.msra.mxu0 0.0
      %409 = vmatprep.subr.mxu0 0.0
      %410 = vmatpush1.msra.mxu0 0.0
      %411 = vmatprep.subr.mxu0 0.0
      %412 = vmatpush1.msra.mxu0 0.0
      %413 = vmatprep.subr.mxu0 0.0
      %414 = vmatpush1.msra.mxu0 0.0
      %415 = vmatprep.mubr.f32.mxu0 0.0
      %416 = vmatmul.mubr.f32.gmra.mrb[0].mxu0 %v340
      %v417 = vpop.f32.mrb[0].mxu0
      %v418 = vadd.f32 %v337, %v417
      %v419 = vpop.f32.mrb[0].mxu0
      %420 = vmatprep.mubr.f32.mxu0 0.0
      %421 = vmatmul.mubr.f32.gmra.mrb[0].mxu0 %v343
      %v422 = vpop.f32.mrb[0].mxu0
      %v423 = vadd.f32 %v337, %v422
      %v424 = vpop.f32.mrb[0].mxu0
      %425 = vmatprep.mubr.f32.mxu0 0.0
      %426 = vmatmul.mubr.f32.gmra.mrb[0].mxu0 %v346
      %v427 = vpop.f32.mrb[0].mxu0
      %v428 = vadd.f32 %v337, %v427
      %v429 = vpop.f32.mrb[0].mxu0
      %430 = vmatprep.mubr.f32.mxu0 0.0
      %431 = vmatmul.mubr.f32.gmra.mrb[0].mxu0 %v349
      %v432 = vpop.f32.mrb[0].mxu0
      %v433 = vadd.f32 %v337, %v432
      %v434 = vpop.f32.mrb[0].mxu0
      %435 = vdwg.mxu0
      %v436 = vtanh.pop %v418
      %v437 = vtanh.pop %v423
      %v438 = vtanh.pop %v428
      %v439 = vtanh.pop %v433
      %v440 = vld [vmem:[%s3] sm:$0xff]
      %v441 = vld [vmem:[%s3 + $0x8] sm:$0xff]
      %v442 = vld [vmem:[%s3 + $0x10] sm:$0xff]
      %v443 = vld [vmem:[%s3 + $0x18] sm:$0xff]
      %v444 = vlaneseq
      %v445 = vshrl.u32 %v444, 7
      %v446 = vsub.s32 3, %v445
      %v447 = vrot.slane %v313, %v446
      %vm448 = vcmask 261120
      %v450 = vsel %vm448, %v436, 0
      %v453 = vsel %vm448, %v437, 0
      %v456 = vsel %vm448, %v438, 0
      %v459 = vsel %vm448, %v439, 0
      %461 = vmatprep.subr.mxu0 0.0
      %462 = vmatpush1.msra.mxu0 %v440
      %463 = vmatprep.subr.mxu0 0.0
      %464 = vmatpush1.msra.mxu0 %v441
      %465 = vmatprep.subr.mxu0 0.0
      %466 = vmatpush1.msra.mxu0 %v442
      %467 = vmatprep.subr.mxu0 0.0
      %468 = vmatpush1.msra.mxu0 %v443
      %469 = vmatprep.subr.mxu0 0.0
      %470 = vmatpush1.msra.mxu0 0.0
      %471 = vmatprep.subr.mxu0 0.0
      %472 = vmatpush1.msra.mxu0 0.0
      %473 = vmatprep.subr.mxu0 0.0
      %474 = vmatpush1.msra.mxu0 0.0
      %475 = vmatprep.subr.mxu0 0.0
      %476 = vmatpush1.msra.mxu0 0.0
      %477 = vmatprep.subr.mxu0 0.0
      %478 = vmatpush1.msra.mxu0 0.0
      %479 = vmatprep.subr.mxu0 0.0
      %480 = vmatpush1.msra.mxu0 0.0
      %481 = vmatprep.subr.mxu0 0.0
      %482 = vmatpush1.msra.mxu0 0.0
      %483 = vmatprep.subr.mxu0 0.0
      %484 = vmatpush1.msra.mxu0 0.0
      %485 = vmatprep.subr.mxu0 0.0
      %486 = vmatpush1.msra.mxu0 0.0
      %487 = vmatprep.subr.mxu0 0.0
      %488 = vmatpush1.msra.mxu0 0.0
      %489 = vmatprep.subr.mxu0 0.0
      %490 = vmatpush1.msra.mxu0 0.0
      %491 = vmatprep.subr.mxu0 0.0
      %492 = vmatpush1.msra.mxu0 0.0
      %493 = vmatprep.subr.mxu0 0.0
      %494 = vmatpush1.msra.mxu0 0.0
      %495 = vmatprep.subr.mxu0 0.0
      %496 = vmatpush1.msra.mxu0 0.0
      %497 = vmatprep.subr.mxu0 0.0
      %498 = vmatpush1.msra.mxu0 0.0
      %499 = vmatprep.subr.mxu0 0.0
      %500 = vmatpush1.msra.mxu0 0.0
      %501 = vmatprep.subr.mxu0 0.0
      %502 = vmatpush1.msra.mxu0 0.0
      %503 = vmatprep.subr.mxu0 0.0
      %504 = vmatpush1.msra.mxu0 0.0
      %505 = vmatprep.subr.mxu0 0.0
      %506 = vmatpush1.msra.mxu0 0.0
      %507 = vmatprep.subr.mxu0 0.0
      %508 = vmatpush1.msra.mxu0 0.0
      %509 = vmatprep.subr.mxu0 0.0
      %510 = vmatpush1.msra.mxu0 0.0
      %511 = vmatprep.subr.mxu0 0.0
      %512 = vmatpush1.msra.mxu0 0.0
      %513 = vmatprep.subr.mxu0 0.0
      %514 = vmatpush1.msra.mxu0 0.0
      %515 = vmatprep.subr.mxu0 0.0
      %516 = vmatpush1.msra.mxu0 0.0
      %517 = vmatprep.subr.mxu0 0.0
      %518 = vmatpush1.msra.mxu0 0.0
      %519 = vmatprep.subr.mxu0 0.0
      %520 = vmatpush1.msra.mxu0 0.0
      %521 = vmatprep.subr.mxu0 0.0
      %522 = vmatpush1.msra.mxu0 0.0
      %523 = vmatprep.subr.mxu0 0.0
      %524 = vmatpush1.msra.mxu0 0.0
      %525 = vmatprep.mubr.f32.mxu0 0.0
      %526 = vmatmul.mubr.f32.gmra.mrb[0].mxu0 %v450
      %v527 = vpop.f32.mrb[0].mxu0
      %v528 = vadd.f32 %v447, %v527
      %v529 = vpop.f32.mrb[0].mxu0
      %530 = vmatprep.mubr.f32.mxu0 0.0
      %531 = vmatmul.mubr.f32.gmra.mrb[0].mxu0 %v453
      %v532 = vpop.f32.mrb[0].mxu0
      %v533 = vadd.f32 %v447, %v532
      %v534 = vpop.f32.mrb[0].mxu0
      %535 = vmatprep.mubr.f32.mxu0 0.0
      %536 = vmatmul.mubr.f32.gmra.mrb[0].mxu0 %v456
      %v537 = vpop.f32.mrb[0].mxu0
      %v538 = vadd.f32 %v447, %v537
      %v539 = vpop.f32.mrb[0].mxu0
      %540 = vmatprep.mubr.f32.mxu0 0.0
      %541 = vmatmul.mubr.f32.gmra.mrb[0].mxu0 %v459
      %v542 = vpop.f32.mrb[0].mxu0
      %v543 = vadd.f32 %v447, %v542
      %v544 = vpop.f32.mrb[0].mxu0
      %545 = vdwg.mxu0
      %v546 = vtanh.pop %v528
      %v547 = vtanh.pop %v533
      %v548 = vtanh.pop %v538
      %v549 = vtanh.pop %v543
      %v550 = vld [vmem:[%s4] sm:$0xff]
      %v551 = vld [vmem:[%s4 + $0x8] sm:$0xff]
      %v552 = vld [vmem:[%s4 + $0x10] sm:$0xff]
      %v553 = vld [vmem:[%s4 + $0x18] sm:$0xff]
      %v554 = vlaneseq
      %v555 = vshrl.u32 %v554, 7
      %v556 = vsub.s32 4, %v555
      %v557 = vrot.slane %v313, %v556
      %v559 = vsel %vm448, %v546, 0
      %v562 = vsel %vm448, %v547, 0
      %v565 = vsel %vm448, %v548, 0
      %v568 = vsel %vm448, %v549, 0
      %570 = vmatprep.subr.mxu0 0.0
      %571 = vmatpush1.msra.mxu0 %v550
      %572 = vmatprep.subr.mxu0 0.0
      %573 = vmatpush1.msra.mxu0 %v551
      %574 = vmatprep.subr.mxu0 0.0
      %575 = vmatpush1.msra.mxu0 %v552
      %576 = vmatprep.subr.mxu0 0.0
      %577 = vmatpush1.msra.mxu0 %v553
      %578 = vmatprep.subr.mxu0 0.0
      %579 = vmatpush1.msra.mxu0 0.0
      %580 = vmatprep.subr.mxu0 0.0
      %581 = vmatpush1.msra.mxu0 0.0
      %582 = vmatprep.subr.mxu0 0.0
      %583 = vmatpush1.msra.mxu0 0.0
      %584 = vmatprep.subr.mxu0 0.0
      %585 = vmatpush1.msra.mxu0 0.0
      %586 = vmatprep.subr.mxu0 0.0
      %587 = vmatpush1.msra.mxu0 0.0
      %588 = vmatprep.subr.mxu0 0.0
      %589 = vmatpush1.msra.mxu0 0.0
      %590 = vmatprep.subr.mxu0 0.0
      %591 = vmatpush1.msra.mxu0 0.0
      %592 = vmatprep.subr.mxu0 0.0
      %593 = vmatpush1.msra.mxu0 0.0
      %594 = vmatprep.subr.mxu0 0.0
      %595 = vmatpush1.msra.mxu0 0.0
      %596 = vmatprep.subr.mxu0 0.0
      %597 = vmatpush1.msra.mxu0 0.0
      %598 = vmatprep.subr.mxu0 0.0
      %599 = vmatpush1.msra.mxu0 0.0
      %600 = vmatprep.subr.mxu0 0.0
      %601 = vmatpush1.msra.mxu0 0.0
      %602 = vmatprep.subr.mxu0 0.0
      %603 = vmatpush1.msra.mxu0 0.0
      %604 = vmatprep.subr.mxu0 0.0
      %605 = vmatpush1.msra.mxu0 0.0
      %606 = vmatprep.subr.mxu0 0.0
      %607 = vmatpush1.msra.mxu0 0.0
      %608 = vmatprep.subr.mxu0 0.0
      %609 = vmatpush1.msra.mxu0 0.0
      %610 = vmatprep.subr.mxu0 0.0
      %611 = vmatpush1.msra.mxu0 0.0
      %612 = vmatprep.subr.mxu0 0.0
      %613 = vmatpush1.msra.mxu0 0.0
      %614 = vmatprep.subr.mxu0 0.0
      %615 = vmatpush1.msra.mxu0 0.0
      %616 = vmatprep.subr.mxu0 0.0
      %617 = vmatpush1.msra.mxu0 0.0
      %618 = vmatprep.subr.mxu0 0.0
      %619 = vmatpush1.msra.mxu0 0.0
      %620 = vmatprep.subr.mxu0 0.0
      %621 = vmatpush1.msra.mxu0 0.0
      %622 = vmatprep.subr.mxu0 0.0
      %623 = vmatpush1.msra.mxu0 0.0
      %624 = vmatprep.subr.mxu0 0.0
      %625 = vmatpush1.msra.mxu0 0.0
      %626 = vmatprep.subr.mxu0 0.0
      %627 = vmatpush1.msra.mxu0 0.0
      %628 = vmatprep.subr.mxu0 0.0
      %629 = vmatpush1.msra.mxu0 0.0
      %630 = vmatprep.subr.mxu0 0.0
      %631 = vmatpush1.msra.mxu0 0.0
      %632 = vmatprep.subr.mxu0 0.0
      %633 = vmatpush1.msra.mxu0 0.0
      %634 = vmatprep.mubr.f32.mxu0 0.0
      %635 = vmatmul.mubr.f32.gmra.mrb[0].mxu0 %v559
      %v636 = vpop.f32.mrb[0].mxu0
      %v637 = vadd.f32 %v557, %v636
      %v638 = vpop.f32.mrb[0].mxu0
      %639 = vmatprep.mubr.f32.mxu0 0.0
      %640 = vmatmul.mubr.f32.gmra.mrb[0].mxu0 %v562
      %v641 = vpop.f32.mrb[0].mxu0
      %v642 = vadd.f32 %v557, %v641
      %v643 = vpop.f32.mrb[0].mxu0
      %644 = vmatprep.mubr.f32.mxu0 0.0
      %645 = vmatmul.mubr.f32.gmra.mrb[0].mxu0 %v565
      %v646 = vpop.f32.mrb[0].mxu0
      %v647 = vadd.f32 %v557, %v646
      %v648 = vpop.f32.mrb[0].mxu0
      %649 = vmatprep.mubr.f32.mxu0 0.0
      %650 = vmatmul.mubr.f32.gmra.mrb[0].mxu0 %v568
      %v651 = vpop.f32.mrb[0].mxu0
      %v652 = vadd.f32 %v557, %v651
      %v653 = vpop.f32.mrb[0].mxu0
      %654 = vdwg.mxu0
      %vm655 = vcmask 64512
      %v656 = vsel %vm655, %v637, 0.0
      %657 = vadd.xlane.f32.xlu0 %v656
      %v658 = vpop.xlane.xlu0 %657
      %v659 = vsel %vm655, %v642, 0.0
      %660 = vadd.xlane.f32.xlu0 %v659
      %v661 = vpop.xlane.xlu0 %660
      %v662 = vsel %vm655, %v647, 0.0
      %663 = vadd.xlane.f32.xlu0 %v662
      %v664 = vpop.xlane.xlu0 %663
      %v665 = vsel %vm655, %v652, 0.0
      %666 = vadd.xlane.f32.xlu0 %v665
      %v667 = vpop.xlane.xlu0 %666
      %v668 = vrcp.pop 8.0
      %v669 = vmul.f32 %v658, %v668
      %v670 = vmul.f32 %v661, %v668
      %v671 = vmul.f32 %v664, %v668
      %v672 = vmul.f32 %v667, %v668
      %v673 = vsub.f32 %v637, %v669
      %v674 = vsub.f32 %v642, %v670
      %v675 = vsub.f32 %v647, %v671
      %v676 = vsub.f32 %v652, %v672
      %v677 = vmul.f32 %v673, %v673
      %v678 = vmul.f32 %v674, %v674
      %v679 = vmul.f32 %v675, %v675
      %v680 = vmul.f32 %v676, %v676
      %v681 = vsel %vm655, %v677, 0.0
      %682 = vadd.xlane.f32.xlu0 %v681
      %v683 = vpop.xlane.xlu0 %682
      %v684 = vsel %vm655, %v678, 0.0
      %685 = vadd.xlane.f32.xlu0 %v684
      %v686 = vpop.xlane.xlu0 %685
      %v687 = vsel %vm655, %v679, 0.0
      %688 = vadd.xlane.f32.xlu0 %v687
      %v689 = vpop.xlane.xlu0 %688
      %v690 = vsel %vm655, %v680, 0.0
      %691 = vadd.xlane.f32.xlu0 %v690
      %v692 = vpop.xlane.xlu0 %691
      %v693 = vmul.f32 %v683, %v668
      %v694 = vmul.f32 %v686, %v668
      %v695 = vmul.f32 %v689, %v668
      %v696 = vmul.f32 %v692, %v668
      %v697 = vadd.f32 %v693, 1e-05
      %v698 = vadd.f32 %v694, 1e-05
      %v699 = vadd.f32 %v695, 1e-05
      %v700 = vadd.f32 %v696, 1e-05
      %v701 = vrsqrt.pop %v697
      %v702 = vrsqrt.pop %v698
      %v703 = vrsqrt.pop %v699
      %v704 = vrsqrt.pop %v700
      %v705 = vmul.f32 %v673, %v701
      %v706 = vmul.f32 %v674, %v702
      %v707 = vmul.f32 %v675, %v703
      %v708 = vmul.f32 %v676, %v704
      %v709 = vlaneseq
      %v710 = vshrl.u32 %v709, 7
      %v711 = vsub.s32 5, %v710
      %v712 = vrot.slane %v313, %v711
      %v713 = vmul.f32 %v705, %v712
      %v714 = vmul.f32 %v706, %v712
      %v715 = vmul.f32 %v707, %v712
      %v716 = vmul.f32 %v708, %v712
      %v717 = vlaneseq
      %v718 = vshrl.u32 %v717, 7
      %v719 = vsub.s32 6, %v718
      %v720 = vrot.slane %v313, %v719
      %v721 = vadd.f32 %v713, %v720
      %v722 = vadd.f32 %v714, %v720
      %v723 = vadd.f32 %v715, %v720
      %v724 = vadd.f32 %v716, %v720
      %v725 = vld [vmem:[%s5] sm:$0xff]
      %v726 = vlaneseq
      %v727 = vshrl.u32 %v726, 7
      %v728 = vsub.s32 7, %v727
      %v729 = vrot.slane %v313, %v728
      %v731 = vsel %vm655, %v721, 0
      %v734 = vsel %vm655, %v722, 0
      %v737 = vsel %vm655, %v723, 0
      %v740 = vsel %vm655, %v724, 0
      %742 = vmatprep.subr.mxu0 0.0
      %743 = vmatpush1.msra.mxu0 %v725
      %744 = vmatprep.subr.mxu0 0.0
      %745 = vmatpush1.msra.mxu0 0.0
      %746 = vmatprep.subr.mxu0 0.0
      %747 = vmatpush1.msra.mxu0 0.0
      %748 = vmatprep.subr.mxu0 0.0
      %749 = vmatpush1.msra.mxu0 0.0
      %750 = vmatprep.subr.mxu0 0.0
      %751 = vmatpush1.msra.mxu0 0.0
      %752 = vmatprep.subr.mxu0 0.0
      %753 = vmatpush1.msra.mxu0 0.0
      %754 = vmatprep.subr.mxu0 0.0
      %755 = vmatpush1.msra.mxu0 0.0
      %756 = vmatprep.subr.mxu0 0.0
      %757 = vmatpush1.msra.mxu0 0.0
      %758 = vmatprep.subr.mxu0 0.0
      %759 = vmatpush1.msra.mxu0 0.0
      %760 = vmatprep.subr.mxu0 0.0
      %761 = vmatpush1.msra.mxu0 0.0
      %762 = vmatprep.subr.mxu0 0.0
      %763 = vmatpush1.msra.mxu0 0.0
      %764 = vmatprep.subr.mxu0 0.0
      %765 = vmatpush1.msra.mxu0 0.0
      %766 = vmatprep.subr.mxu0 0.0
      %767 = vmatpush1.msra.mxu0 0.0
      %768 = vmatprep.subr.mxu0 0.0
      %769 = vmatpush1.msra.mxu0 0.0
      %770 = vmatprep.subr.mxu0 0.0
      %771 = vmatpush1.msra.mxu0 0.0
      %772 = vmatprep.subr.mxu0 0.0
      %773 = vmatpush1.msra.mxu0 0.0
      %774 = vmatprep.subr.mxu0 0.0
      %775 = vmatpush1.msra.mxu0 0.0
      %776 = vmatprep.subr.mxu0 0.0
      %777 = vmatpush1.msra.mxu0 0.0
      %778 = vmatprep.subr.mxu0 0.0
      %779 = vmatpush1.msra.mxu0 0.0
      %780 = vmatprep.subr.mxu0 0.0
      %781 = vmatpush1.msra.mxu0 0.0
      %782 = vmatprep.subr.mxu0 0.0
      %783 = vmatpush1.msra.mxu0 0.0
      %784 = vmatprep.subr.mxu0 0.0
      %785 = vmatpush1.msra.mxu0 0.0
      %786 = vmatprep.subr.mxu0 0.0
      %787 = vmatpush1.msra.mxu0 0.0
      %788 = vmatprep.subr.mxu0 0.0
      %789 = vmatpush1.msra.mxu0 0.0
      %790 = vmatprep.subr.mxu0 0.0
      %791 = vmatpush1.msra.mxu0 0.0
      %792 = vmatprep.subr.mxu0 0.0
      %793 = vmatpush1.msra.mxu0 0.0
      %794 = vmatprep.subr.mxu0 0.0
      %795 = vmatpush1.msra.mxu0 0.0
      %796 = vmatprep.subr.mxu0 0.0
      %797 = vmatpush1.msra.mxu0 0.0
      %798 = vmatprep.subr.mxu0 0.0
      %799 = vmatpush1.msra.mxu0 0.0
      %800 = vmatprep.subr.mxu0 0.0
      %801 = vmatpush1.msra.mxu0 0.0
      %802 = vmatprep.subr.mxu0 0.0
      %803 = vmatpush1.msra.mxu0 0.0
      %804 = vmatprep.subr.mxu0 0.0
      %805 = vmatpush1.msra.mxu0 0.0
      %806 = vmatprep.mubr.f32.mxu0 0.0
      %807 = vmatmul.mubr.f32.gmra.mrb[0].mxu0 %v731
      %v808 = vpop.f32.mrb[0].mxu0
      %v809 = vadd.f32 %v729, %v808
      %v810 = vpop.f32.mrb[0].mxu0
      %811 = vmatprep.mubr.f32.mxu0 0.0
      %812 = vmatmul.mubr.f32.gmra.mrb[0].mxu0 %v734
      %v813 = vpop.f32.mrb[0].mxu0
      %v814 = vadd.f32 %v729, %v813
      %v815 = vpop.f32.mrb[0].mxu0
      %816 = vmatprep.mubr.f32.mxu0 0.0
      %817 = vmatmul.mubr.f32.gmra.mrb[0].mxu0 %v737
      %v818 = vpop.f32.mrb[0].mxu0
      %v819 = vadd.f32 %v729, %v818
      %v820 = vpop.f32.mrb[0].mxu0
      %821 = vmatprep.mubr.f32.mxu0 0.0
      %822 = vmatmul.mubr.f32.gmra.mrb[0].mxu0 %v740
      %v823 = vpop.f32.mrb[0].mxu0
      %v824 = vadd.f32 %v729, %v823
      %v825 = vpop.f32.mrb[0].mxu0
      %826 = vdwg.mxu0
      %v827 = vtanh.pop %v809
      %v828 = vtanh.pop %v814
      %v829 = vtanh.pop %v819
      %v830 = vtanh.pop %v824
      %v831 = vld [vmem:[%s6] sm:$0xff]
      %v832 = vld [vmem:[%s6 + $0x8] sm:$0xff]
      %v833 = vld [vmem:[%s6 + $0x10] sm:$0xff]
      %v834 = vld [vmem:[%s6 + $0x18] sm:$0xff]
      %v835 = vlaneseq
      %v836 = vshrl.u32 %v835, 7
      %v837 = vsub.s32 0, %v836
      %v838 = vrot.slane %v314, %v837
      %v840 = vsel %vm448, %v827, 0
      %v843 = vsel %vm448, %v828, 0
      %v846 = vsel %vm448, %v829, 0
      %v849 = vsel %vm448, %v830, 0
      %851 = vmatprep.subr.mxu0 0.0
      %852 = vmatpush1.msra.mxu0 %v831
      %853 = vmatprep.subr.mxu0 0.0
      %854 = vmatpush1.msra.mxu0 %v832
      %855 = vmatprep.subr.mxu0 0.0
      %856 = vmatpush1.msra.mxu0 %v833
      %857 = vmatprep.subr.mxu0 0.0
      %858 = vmatpush1.msra.mxu0 %v834
      %859 = vmatprep.subr.mxu0 0.0
      %860 = vmatpush1.msra.mxu0 0.0
      %861 = vmatprep.subr.mxu0 0.0
      %862 = vmatpush1.msra.mxu0 0.0
      %863 = vmatprep.subr.mxu0 0.0
      %864 = vmatpush1.msra.mxu0 0.0
      %865 = vmatprep.subr.mxu0 0.0
      %866 = vmatpush1.msra.mxu0 0.0
      %867 = vmatprep.subr.mxu0 0.0
      %868 = vmatpush1.msra.mxu0 0.0
      %869 = vmatprep.subr.mxu0 0.0
      %870 = vmatpush1.msra.mxu0 0.0
      %871 = vmatprep.subr.mxu0 0.0
      %872 = vmatpush1.msra.mxu0 0.0
      %873 = vmatprep.subr.mxu0 0.0
      %874 = vmatpush1.msra.mxu0 0.0
      %875 = vmatprep.subr.mxu0 0.0
      %876 = vmatpush1.msra.mxu0 0.0
      %877 = vmatprep.subr.mxu0 0.0
      %878 = vmatpush1.msra.mxu0 0.0
      %879 = vmatprep.subr.mxu0 0.0
      %880 = vmatpush1.msra.mxu0 0.0
      %881 = vmatprep.subr.mxu0 0.0
      %882 = vmatpush1.msra.mxu0 0.0
      %883 = vmatprep.subr.mxu0 0.0
      %884 = vmatpush1.msra.mxu0 0.0
      %885 = vmatprep.subr.mxu0 0.0
      %886 = vmatpush1.msra.mxu0 0.0
      %887 = vmatprep.subr.mxu0 0.0
      %888 = vmatpush1.msra.mxu0 0.0
      %889 = vmatprep.subr.mxu0 0.0
      %890 = vmatpush1.msra.mxu0 0.0
      %891 = vmatprep.subr.mxu0 0.0
      %892 = vmatpush1.msra.mxu0 0.0
      %893 = vmatprep.subr.mxu0 0.0
      %894 = vmatpush1.msra.mxu0 0.0
      %895 = vmatprep.subr.mxu0 0.0
      %896 = vmatpush1.msra.mxu0 0.0
      %897 = vmatprep.subr.mxu0 0.0
      %898 = vmatpush1.msra.mxu0 0.0
      %899 = vmatprep.subr.mxu0 0.0
      %900 = vmatpush1.msra.mxu0 0.0
      %901 = vmatprep.subr.mxu0 0.0
      %902 = vmatpush1.msra.mxu0 0.0
      %903 = vmatprep.subr.mxu0 0.0
      %904 = vmatpush1.msra.mxu0 0.0
      %905 = vmatprep.subr.mxu0 0.0
      %906 = vmatpush1.msra.mxu0 0.0
      %907 = vmatprep.subr.mxu0 0.0
      %908 = vmatpush1.msra.mxu0 0.0
      %909 = vmatprep.subr.mxu0 0.0
      %910 = vmatpush1.msra.mxu0 0.0
      %911 = vmatprep.subr.mxu0 0.0
      %912 = vmatpush1.msra.mxu0 0.0
      %913 = vmatprep.subr.mxu0 0.0
      %914 = vmatpush1.msra.mxu0 0.0
      %915 = vmatprep.mubr.f32.mxu0 0.0
      %916 = vmatmul.mubr.f32.gmra.mrb[0].mxu0 %v840
      %v917 = vpop.f32.mrb[0].mxu0
      %v918 = vadd.f32 %v838, %v917
      %v919 = vpop.f32.mrb[0].mxu0
      %920 = vmatprep.mubr.f32.mxu0 0.0
      %921 = vmatmul.mubr.f32.gmra.mrb[0].mxu0 %v843
      %v922 = vpop.f32.mrb[0].mxu0
      %v923 = vadd.f32 %v838, %v922
      %v924 = vpop.f32.mrb[0].mxu0
      %925 = vmatprep.mubr.f32.mxu0 0.0
      %926 = vmatmul.mubr.f32.gmra.mrb[0].mxu0 %v846
      %v927 = vpop.f32.mrb[0].mxu0
      %v928 = vadd.f32 %v838, %v927
      %v929 = vpop.f32.mrb[0].mxu0
      %930 = vmatprep.mubr.f32.mxu0 0.0
      %931 = vmatmul.mubr.f32.gmra.mrb[0].mxu0 %v849
      %v932 = vpop.f32.mrb[0].mxu0
      %v933 = vadd.f32 %v838, %v932
      %v934 = vpop.f32.mrb[0].mxu0
      %935 = vdwg.mxu0
      %v936 = vtanh.pop %v918
      %v937 = vtanh.pop %v923
      %v938 = vtanh.pop %v928
      %v939 = vtanh.pop %v933
      %v940 = vld [vmem:[%s7] sm:$0xff]
      %v941 = vld [vmem:[%s7 + $0x8] sm:$0xff]
      %v942 = vld [vmem:[%s7 + $0x10] sm:$0xff]
      %v943 = vld [vmem:[%s7 + $0x18] sm:$0xff]
      %v944 = vlaneseq
      %v945 = vshrl.u32 %v944, 7
      %v946 = vsub.s32 1, %v945
      %v947 = vrot.slane %v314, %v946
      %v949 = vsel %vm448, %v936, 0
      %v952 = vsel %vm448, %v937, 0
      %v955 = vsel %vm448, %v938, 0
      %v958 = vsel %vm448, %v939, 0
      %960 = vmatprep.subr.mxu0 0.0
      %961 = vmatpush1.msra.mxu0 %v940
      %962 = vmatprep.subr.mxu0 0.0
      %963 = vmatpush1.msra.mxu0 %v941
      %964 = vmatprep.subr.mxu0 0.0
      %965 = vmatpush1.msra.mxu0 %v942
      %966 = vmatprep.subr.mxu0 0.0
      %967 = vmatpush1.msra.mxu0 %v943
      %968 = vmatprep.subr.mxu0 0.0
      %969 = vmatpush1.msra.mxu0 0.0
      %970 = vmatprep.subr.mxu0 0.0
      %971 = vmatpush1.msra.mxu0 0.0
      %972 = vmatprep.subr.mxu0 0.0
      %973 = vmatpush1.msra.mxu0 0.0
      %974 = vmatprep.subr.mxu0 0.0
      %975 = vmatpush1.msra.mxu0 0.0
      %976 = vmatprep.subr.mxu0 0.0
      %977 = vmatpush1.msra.mxu0 0.0
      %978 = vmatprep.subr.mxu0 0.0
      %979 = vmatpush1.msra.mxu0 0.0
      %980 = vmatprep.subr.mxu0 0.0
      %981 = vmatpush1.msra.mxu0 0.0
      %982 = vmatprep.subr.mxu0 0.0
      %983 = vmatpush1.msra.mxu0 0.0
      %984 = vmatprep.subr.mxu0 0.0
      %985 = vmatpush1.msra.mxu0 0.0
      %986 = vmatprep.subr.mxu0 0.0
      %987 = vmatpush1.msra.mxu0 0.0
      %988 = vmatprep.subr.mxu0 0.0
      %989 = vmatpush1.msra.mxu0 0.0
      %990 = vmatprep.subr.mxu0 0.0
      %991 = vmatpush1.msra.mxu0 0.0
      %992 = vmatprep.subr.mxu0 0.0
      %993 = vmatpush1.msra.mxu0 0.0
      %994 = vmatprep.subr.mxu0 0.0
      %995 = vmatpush1.msra.mxu0 0.0
      %996 = vmatprep.subr.mxu0 0.0
      %997 = vmatpush1.msra.mxu0 0.0
      %998 = vmatprep.subr.mxu0 0.0
      %999 = vmatpush1.msra.mxu0 0.0
      %1000 = vmatprep.subr.mxu0 0.0
      %1001 = vmatpush1.msra.mxu0 0.0
      %1002 = vmatprep.subr.mxu0 0.0
      %1003 = vmatpush1.msra.mxu0 0.0
      %1004 = vmatprep.subr.mxu0 0.0
      %1005 = vmatpush1.msra.mxu0 0.0
      %1006 = vmatprep.subr.mxu0 0.0
      %1007 = vmatpush1.msra.mxu0 0.0
      %1008 = vmatprep.subr.mxu0 0.0
      %1009 = vmatpush1.msra.mxu0 0.0
      %1010 = vmatprep.subr.mxu0 0.0
      %1011 = vmatpush1.msra.mxu0 0.0
      %1012 = vmatprep.subr.mxu0 0.0
      %1013 = vmatpush1.msra.mxu0 0.0
      %1014 = vmatprep.subr.mxu0 0.0
      %1015 = vmatpush1.msra.mxu0 0.0
      %1016 = vmatprep.subr.mxu0 0.0
      %1017 = vmatpush1.msra.mxu0 0.0
      %1018 = vmatprep.subr.mxu0 0.0
      %1019 = vmatpush1.msra.mxu0 0.0
      %1020 = vmatprep.subr.mxu0 0.0
      %1021 = vmatpush1.msra.mxu0 0.0
      %1022 = vmatprep.subr.mxu0 0.0
      %1023 = vmatpush1.msra.mxu0 0.0
      %1024 = vmatprep.mubr.f32.mxu0 0.0
      %1025 = vmatmul.mubr.f32.gmra.mrb[0].mxu0 %v949
      %v1026 = vpop.f32.mrb[0].mxu0
      %v1027 = vadd.f32 %v947, %v1026
      %v1028 = vpop.f32.mrb[0].mxu0
      %1029 = vmatprep.mubr.f32.mxu0 0.0
      %1030 = vmatmul.mubr.f32.gmra.mrb[0].mxu0 %v952
      %v1031 = vpop.f32.mrb[0].mxu0
      %v1032 = vadd.f32 %v947, %v1031
      %v1033 = vpop.f32.mrb[0].mxu0
      %1034 = vmatprep.mubr.f32.mxu0 0.0
      %1035 = vmatmul.mubr.f32.gmra.mrb[0].mxu0 %v955
      %v1036 = vpop.f32.mrb[0].mxu0
      %v1037 = vadd.f32 %v947, %v1036
      %v1038 = vpop.f32.mrb[0].mxu0
      %1039 = vmatprep.mubr.f32.mxu0 0.0
      %1040 = vmatmul.mubr.f32.gmra.mrb[0].mxu0 %v958
      %v1041 = vpop.f32.mrb[0].mxu0
      %v1042 = vadd.f32 %v947, %v1041
      %v1043 = vpop.f32.mrb[0].mxu0
      %1044 = vdwg.mxu0
      %v1045 = vlaneseq
      %v1046 = vshrl.u32 %v1045, 7
      %v1047 = vsub.s32 1, %v1046
      %v1048 = vrot.slane %v313, %v1047
      %v1049 = vmul.f32 %v1048, %v1027
      %v1050 = vmul.f32 %v1048, %v1032
      %v1051 = vmul.f32 %v1048, %v1037
      %v1052 = vmul.f32 %v1048, %v1042
      %v1053 = vadd.f32 %v1049, %v319
      %v1054 = vadd.f32 %v1050, %v319
      %v1055 = vadd.f32 %v1051, %v319
      %v1056 = vadd.f32 %v1052, %v319
      %1057 = vst.msk [vmem:[%s307] sm:$0xff] %vm338, %v1053
      %1058 = vst.msk [vmem:[%s307 + $0x8] sm:$0xff] %vm338, %v1054
      %1059 = vst.msk [vmem:[%s307 + $0x10] sm:$0xff] %vm338, %v1055
      %1060 = vst.msk [vmem:[%s307 + $0x18] sm:$0xff] %vm338, %v1056
      %s1061 = smul.u32 4, %s19
      %p1062 = scmp.lt.s32.totalorder %s1061, 15
      %s1063 = scalar_select %p1062, %s1061, 15
      %s1064 = smul.addr %s1063, 8
      %s1065 = scalar_lea.vmem %s8, %s1064
      // Predicated region
      $region53: #{koopman_autoencoder_forward.1} parent=51 // pred_check
        %p1066 = pneg %p210
      $region54: #{koopman_autoencoder_forward.1} parent=51 // pred_check_branch
        %1068 = sbr.rel (%p1066) target = $region56
      $region55: #{koopman_autoencoder_forward.1} parent=51 // pred_region
        %s1069 = smul.u32 4, %s19
      $region56: #{koopman_autoencoder_forward.1} parent=51 // pred_fallthru
        _
    $region52: #{koopman_autoencoder_forward.1} parent=5 // pred_fallthru
      _
    %p1070 = scmp.le.s32.totalorder 2, %s14
    // Predicated region
    $region57: #{koopman_autoencoder_forward.1} parent=5 // pred_check
      %p1071 = pneg %p1070
    $region58: #{koopman_autoencoder_forward.1} parent=5 // pred_check_branch
      %1073 = sbr.rel (%p1071) target = $region60
    $region59: #{koopman_autoencoder_forward.1} parent=5 // pred_region
      %s1074 = ssub.s32 %s14, 2
      // Predicated region
      $region61: #{koopman_autoencoder_forward.1} parent=59 // pred_check
        %p1075 = pneg %p216
      $region62: #{koopman_autoencoder_forward.1} parent=59 // pred_check_branch
        %1077 = sbr.rel (%p1075) target = $region64
      $region63: #{koopman_autoencoder_forward.1} parent=59 // pred_region
        %s1078 = smul.u32 4, %s20
        %p1079 = scmp.lt.s32.totalorder %s1078, 15
        %s1080 = scalar_select %p1079, %s1078, 15
        %s1081 = smul.addr %s1080, 8
        %s1082 = scalar_lea.vmem %s8, %s1081
      $region64: #{koopman_autoencoder_forward.1} parent=59 // pred_fallthru
        _
    $region60: #{koopman_autoencoder_forward.1} parent=5 // pred_fallthru
      _
  $region6: #{koopman_autoencoder_forward.1} parent=0 // loop_footer
    %s18 = sadd.s32 1, %s14
  $region7: #{koopman_autoencoder_forward.1} parent=0 // loop_footer_branch
    %13 = sbr.rel target = $region3
  $region8: #{koopman_autoencoder_forward.1} parent=0 // loop_exit
    _

</llo_original>
